<compile_context>
chip_gen: v6e
topology: v6e:2x2x1
jax: 0.10.0
libtpu: 0.0.40
codegen_flags: <defaults>
</compile_context>

<pallas_src>
import jax
import jax.numpy as jnp
from jax import lax
from jax.experimental import pallas as pl
from jax.experimental.pallas import tpu as pltpu


def _round_up(n, m):
    return ((n + m - 1) // m) * m


def mlp_kernel(x_ref, w1_ref, b1_ref, w2_ref, b2_ref, w3_ref, b3_ref, o_ref):
    # x_ref:  (TB, D) f32 (native layout)  | w1_ref: (H1, D)  bf16 | b1_ref: (H1, 1) f32
    # w2_ref: (H2, H1) bf16                | b2_ref: (H2, 1)  f32  | w3_ref: (H2, 1) f32
    # b3_ref: (1, 1) f32 in SMEM           | o_ref:  (1, TB)  f32 (lane-dense, batch on lanes)

    x = x_ref[...].astype(jnp.bfloat16)     # x is read from HBM exactly once, as f32

    # Layer 1: Linear + ReLU (Dropout = identity in eval mode).
    # Contract x over its LAST dim so the MXU consumes the transposed operand and
    # emits h1^T directly (batch stays on the lane axis; D is small so any layout
    # fixup rides the XLU slot).
    h = lax.dot_general(
        w1_ref[...], x,
        dimension_numbers=(((1,), (1,)), ((), ())),
        preferred_element_type=jnp.float32)                         # (H1, TB)
    h = jnp.maximum(h + b1_ref[...], 0.0).astype(jnp.bfloat16)      # epilogue cast: retire f32 early

    # Layer 2: Linear + ReLU (Dropout = identity in eval mode).
    h = jnp.dot(w2_ref[...], h, preferred_element_type=jnp.float32) # (H2, TB)
    h = jnp.maximum(h + b2_ref[...], 0.0)

    # Output layer (out_features = 1): VPU multiply + sublane reduce + scalar bias
    # from SMEM + sigmoid -- no 1-column MXU matmul.
    logits = jnp.sum(h * w3_ref[...], axis=0, keepdims=True) + b3_ref[0, 0]
    o_ref[...] = jax.nn.sigmoid(logits)                              # (1, TB) lane-dense store


def mlp_classifier_forward(x, params, *, block_b=1024):
    """Fused MLP forward pass. x: (B, D) f32 -> (B,) f32 sigmoid probabilities."""
    w1, b1, w2, b2, w3, b3 = params   # (D,H1),(1,H1),(H1,H2),(1,H2),(H2,1),(1,1)
    B, D = x.shape
    H1 = w1.shape[1]
    H2 = w2.shape[1]

    # --- Batch tile (lane axis of intermediates / output). ---
    # Multiple of 256 = full MXU lane width on v6e/v7x (128 when the batch is tiny);
    # as large as block_b allows -> fewer ~0.35us pipeline steps, unmasked stores.
    align = 256 if B > 128 else 128
    TB = max(align, _round_up(min(block_b, B), align))
    # Keep >= 2 grid steps when the batch spans more than one aligned tile so the
    # "parallel" axis can shard across v7x's 2 TensorCores (no-op on v5e/v6e).
    if pl.cdiv(B, TB) < 2 and B > align:
        TB = _round_up(pl.cdiv(B, 2), align)
    grid = (pl.cdiv(B, TB),)   # ragged last block handled by Pallas; no padded copy of x

    # Weight prep (one-time, tiny arrays): MXU operands in bf16, epilogue operands f32.
    # TODO(synk): for large H1/H2, quantize W1/W2 to int8 (v5e/v6e) or fp8 (v7x) with
    # per-output-channel scales folded into the f32 bias epilogue.
    w1T = w1.T.astype(jnp.bfloat16)                    # (H1, D)
    w2T = w2.T.astype(jnp.bfloat16)                    # (H2, H1)
    b1c = b1.reshape(H1, 1).astype(jnp.float32)
    b2c = b2.reshape(H2, 1).astype(jnp.float32)
    w3c = w3.reshape(H2, 1).astype(jnp.float32)
    b3s = b3.reshape(1, 1).astype(jnp.float32)

    # VMEM budget: double-buffered x/out tiles + resident weights (default 2 buffers)
    # + the f32 (H1,TB)/(H2,TB) in-kernel intermediates.  Sets vmem_limit_bytes.
    # TODO(synk): when hidden dims grow (v7x: 64 MiB physical VMEM), single-buffer the
    # resident weight specs (pipeline_mode=pl.Buffered(1)) and/or add an "arbitrary"
    # reduction grid axis over H1 with an f32 accumulator instead of resident W2.
    vmem_need = (
        2 * TB * D * 4                    # x tiles (f32, double-buffered)
        + 2 * TB * 4                      # out tiles (f32, double-buffered)
        + 2 * (H1 * D + H2 * H1) * 2      # resident bf16 weights (x2 default buffers)
        + 2 * (H1 + 2 * H2) * 4           # resident f32 bias / w3 columns
        + (H1 + H2) * TB * 4              # in-kernel f32 intermediates
    )
    vmem_limit = min(max(2 * vmem_need, 32 * 1024 * 1024), 64 * 1024 * 1024)

    # Weights/biases: constant index_map -> resident in VMEM across the batch grid.
    resident = lambda shape: pl.BlockSpec(shape, lambda i: (0, 0))

    out = pl.pallas_call(
        mlp_kernel,
        out_shape=jax.ShapeDtypeStruct((1, B), jnp.float32),
        grid=grid,
        in_specs=[
            pl.BlockSpec((TB, D), lambda i: (i, 0)),              # x tile, native layout
            resident((H1, D)),                                     # W1^T
            resident((H1, 1)),                                     # b1
            resident((H2, H1)),                                    # W2^T
            resident((H2, 1)),                                     # b2
            resident((H2, 1)),                                     # w3 column
            pl.BlockSpec(memory_space=pltpu.MemorySpace.SMEM),     # b3 scalar
        ],
        out_specs=pl.BlockSpec((1, TB), lambda i: (0, i)),         # lane-dense output
        compiler_params=pltpu.CompilerParams(
            dimension_semantics=("parallel",),   # independent batch tiles (v7x: 2 TCs)
            vmem_limit_bytes=vmem_limit,
        ),
    )(x, w1T, b1c, w2T, b2c, w3c, b3s)

    # Leading singleton drop matches the module's .squeeze().
    return out[0, :]


def init_params(key, input_dim, hidden_dims):
    """Deterministic PyTorch-style Linear init: U(-1/sqrt(fan_in), 1/sqrt(fan_in))."""
    dims = [input_dim] + list(hidden_dims) + [1]
    params = []
    for i in range(len(dims) - 1):
        in_d, out_d = dims[i], dims[i + 1]
        key, kw, kb = jax.random.split(key, 3)
        bound = 1.0 / jnp.sqrt(jnp.float32(in_d))
        w = jax.random.uniform(kw, (in_d, out_d), jnp.float32, -bound, bound)
        b = jax.random.uniform(kb, (1, out_d), jnp.float32, -bound, bound)
        params.extend([w, b])
    return tuple(params)


if __name__ == "__main__":
    # TODO(synk): training-mode nn.Dropout (stochastic masking + 1/(1-p) scaling) not
    # implemented; forward matches the module in eval/inference mode (Dropout = no-op).
    B = 300            # deliberately not a multiple of the 256-lane tile: ragged last block
    input_dim = 16
    hidden_dims = [32, 32]

    key = jax.random.PRNGKey(0)
    key, kx = jax.random.split(key)
    x = jax.random.normal(kx, (B, input_dim), dtype=jnp.float32)
    params = init_params(key, input_dim, hidden_dims)

    # Default block_b -> TB=256, grid=(2,): one tile per TensorCore on v7x,
    # two pipelined steps on v5e/v6e.
    y = mlp_classifier_forward(x, params)
    jax.block_until_ready(y)

    # Plain-JAX reference with matching bf16 MXU quantization (f32 accumulate).
    w1, b1, w2, b2, w3, b3 = params
    xb = x.astype(jnp.bfloat16)
    h = jnp.maximum(jnp.dot(xb, w1.astype(jnp.bfloat16),
                            preferred_element_type=jnp.float32) + b1, 0.0)
    h = jnp.maximum(jnp.dot(h.astype(jnp.bfloat16), w2.astype(jnp.bfloat16),
                            preferred_element_type=jnp.float32) + b2, 0.0)
    ref = jax.nn.sigmoid(h @ w3 + b3).squeeze()

    assert y.shape == (B,)
    assert jnp.allclose(y, ref, atol=2e-3, rtol=2e-3), float(jnp.max(jnp.abs(y - ref)))

    print("KERNEL_OK")
</pallas_src>

<mosaic_0001>
module attributes {stable_mosaic.version = 11 : i64} {
  func.func @mlp_kernel(%arg0: i32, %arg1: memref<256x16xf32, #tpu.memory_space<vmem>>, %arg2: memref<32x16xbf16, #tpu.memory_space<vmem>>, %arg3: memref<32x1xf32, #tpu.memory_space<vmem>>, %arg4: memref<32x32xbf16, #tpu.memory_space<vmem>>, %arg5: memref<32x1xf32, #tpu.memory_space<vmem>>, %arg6: memref<32x1xf32, #tpu.memory_space<vmem>>, %arg7: memref<1x1xf32, #tpu.memory_space<smem>>, %arg8: memref<1x256xf32, #tpu.memory_space<vmem>>) attributes {dimension_semantics = [#tpu.dimension_semantics<parallel>], iteration_bounds = array<i64: 2>, scalar_prefetch = 0 : i64, scratch_operands = 0 : i64, tpu.core_type = #tpu.core_type<tc>, window_params = [{transform_indices = @transform_0, window_bounds = array<i64: 256, 16>}, {pipeline_mode = #tpu.pipeline_mode<synchronous>, transform_indices = @transform_1, window_bounds = array<i64: 32, 16>}, {pipeline_mode = #tpu.pipeline_mode<synchronous>, transform_indices = @transform_2, window_bounds = array<i64: 32, 1>}, {pipeline_mode = #tpu.pipeline_mode<synchronous>, transform_indices = @transform_3, window_bounds = array<i64: 32, 32>}, {pipeline_mode = #tpu.pipeline_mode<synchronous>, transform_indices = @transform_4, window_bounds = array<i64: 32, 1>}, {pipeline_mode = #tpu.pipeline_mode<synchronous>, transform_indices = @transform_5, window_bounds = array<i64: 32, 1>}, {transform_indices = @transform_6, window_bounds = array<i64: 1, 1>}, {transform_indices = @transform_7, window_bounds = array<i64: 1, 256>}]} {
    %c0 = arith.constant 0 : index
    %c0_0 = arith.constant 0 : index
    %0 = vector.load %arg1[%c0, %c0_0] : memref<256x16xf32, #tpu.memory_space<vmem>>, vector<256x16xf32>
    %1 = arith.truncf %0 : vector<256x16xf32> to vector<256x16xbf16>
    %c0_1 = arith.constant 0 : index
    %c0_2 = arith.constant 0 : index
    %2 = vector.load %arg2[%c0_1, %c0_2] : memref<32x16xbf16, #tpu.memory_space<vmem>>, vector<32x16xbf16>
    %cst = arith.constant dense<0.000000e+00> : vector<32x256xf32>
    %3 = tpu.matmul %2, %1, %cst {dimension_numbers = #tpu.dot_dimension_numbers<[1], [1], [0], [0], [0, 0, 1, 0], [], []>} : vector<32x16xbf16>, vector<256x16xbf16>, vector<32x256xf32> -> vector<32x256xf32>
    %c0_3 = arith.constant 0 : index
    %c0_4 = arith.constant 0 : index
    %4 = vector.load %arg3[%c0_3, %c0_4] : memref<32x1xf32, #tpu.memory_space<vmem>>, vector<32x1xf32>
    %5 = vector.broadcast %4 : vector<32x1xf32> to vector<32x256xf32>
    %6 = arith.addf %3, %5 : vector<32x256xf32>
    %cst_5 = arith.constant 0.000000e+00 : f32
    %7 = vector.broadcast %cst_5 : f32 to vector<32x256xf32>
    %8 = arith.maximumf %6, %7 : vector<32x256xf32>
    %9 = arith.truncf %8 : vector<32x256xf32> to vector<32x256xbf16>
    %c0_6 = arith.constant 0 : index
    %c0_7 = arith.constant 0 : index
    %10 = vector.load %arg4[%c0_6, %c0_7] : memref<32x32xbf16, #tpu.memory_space<vmem>>, vector<32x32xbf16>
    %cst_8 = arith.constant dense<0.000000e+00> : vector<32x256xf32>
    %11 = tpu.matmul %10, %9, %cst_8 {dimension_numbers = #tpu.dot_dimension_numbers<[1], [0], [0], [1], [0, 0, 1, 1], [], []>} : vector<32x32xbf16>, vector<32x256xbf16>, vector<32x256xf32> -> vector<32x256xf32>
    %c0_9 = arith.constant 0 : index
    %c0_10 = arith.constant 0 : index
    %12 = vector.load %arg5[%c0_9, %c0_10] : memref<32x1xf32, #tpu.memory_space<vmem>>, vector<32x1xf32>
    %13 = vector.broadcast %12 : vector<32x1xf32> to vector<32x256xf32>
    %14 = arith.addf %11, %13 : vector<32x256xf32>
    %cst_11 = arith.constant 0.000000e+00 : f32
    %15 = vector.broadcast %cst_11 : f32 to vector<32x256xf32>
    %16 = arith.maximumf %14, %15 : vector<32x256xf32>
    %c0_12 = arith.constant 0 : index
    %c0_13 = arith.constant 0 : index
    %17 = vector.load %arg6[%c0_12, %c0_13] : memref<32x1xf32, #tpu.memory_space<vmem>>, vector<32x1xf32>
    %18 = vector.broadcast %17 : vector<32x1xf32> to vector<32x256xf32>
    %19 = arith.mulf %16, %18 : vector<32x256xf32>
    %cst_14 = arith.constant dense<0.000000e+00> : vector<256xf32>
    %20 = vector.multi_reduction <add>, %19, %cst_14 [0] : vector<32x256xf32> to vector<256xf32>
    %21 = vector.shape_cast %20 : vector<256xf32> to vector<1x256xf32>
    %c0_15 = arith.constant 0 : index
    %c0_16 = arith.constant 0 : index
    %22 = memref.load %arg7[%c0_15, %c0_16] : memref<1x1xf32, #tpu.memory_space<smem>>
    %23 = vector.broadcast %22 : f32 to vector<1x256xf32>
    %24 = arith.addf %21, %23 : vector<1x256xf32>
    %25 = arith.negf %24 : vector<1x256xf32>
    %26 = math.exp %25 : vector<1x256xf32>
    %cst_17 = arith.constant 1.000000e+00 : f32
    %27 = vector.broadcast %cst_17 : f32 to vector<1x256xf32>
    %28 = arith.addf %27, %26 : vector<1x256xf32>
    %29 = arith.divf %27, %28 : vector<1x256xf32>
    %c0_18 = arith.constant 0 : index
    %c0_19 = arith.constant 0 : index
    %30 = vector.load %arg8[%c0_18, %c0_19] : memref<1x256xf32, #tpu.memory_space<vmem>>, vector<1x256xf32>
    tpu.vector_store %arg8[%c0_18, %c0_19], %29 {strides = array<i32>} : memref<1x256xf32, #tpu.memory_space<vmem>>, vector<1x256xf32>,
    return
  }
  func.func @transform_0(%arg0: i32) -> (i32, i32) {
    %c0_i32 = arith.constant 0 : i32
    %c0_i32_0 = arith.constant 0 : i32
    return %arg0, %c0_i32 : i32, i32
  }
  func.func @transform_1(%arg0: i32) -> (i32, i32) {
    %c0_i32 = arith.constant 0 : i32
    %c0_i32_0 = arith.constant 0 : i32
    %c0_i32_1 = arith.constant 0 : i32
    return %c0_i32, %c0_i32_0 : i32, i32
  }
  func.func @transform_2(%arg0: i32) -> (i32, i32) {
    %c0_i32 = arith.constant 0 : i32
    %c0_i32_0 = arith.constant 0 : i32
    %c0_i32_1 = arith.constant 0 : i32
    return %c0_i32, %c0_i32_0 : i32, i32
  }
  func.func @transform_3(%arg0: i32) -> (i32, i32) {
    %c0_i32 = arith.constant 0 : i32
    %c0_i32_0 = arith.constant 0 : i32
    %c0_i32_1 = arith.constant 0 : i32
    return %c0_i32, %c0_i32_0 : i32, i32
  }
  func.func @transform_4(%arg0: i32) -> (i32, i32) {
    %c0_i32 = arith.constant 0 : i32
    %c0_i32_0 = arith.constant 0 : i32
    %c0_i32_1 = arith.constant 0 : i32
    return %c0_i32, %c0_i32_0 : i32, i32
  }
  func.func @transform_5(%arg0: i32) -> (i32, i32) {
    %c0_i32 = arith.constant 0 : i32
    %c0_i32_0 = arith.constant 0 : i32
    %c0_i32_1 = arith.constant 0 : i32
    return %c0_i32, %c0_i32_0 : i32, i32
  }
  func.func @transform_6(%arg0: i32) -> (i32, i32) {
    %c0_i32 = arith.constant 0 : i32
    %c0_i32_0 = arith.constant 0 : i32
    %c0_i32_1 = arith.constant 0 : i32
    return %c0_i32, %c0_i32_0 : i32, i32
  }
  func.func @transform_7(%arg0: i32) -> (i32, i32) {
    %c0_i32 = arith.constant 0 : i32
    %c0_i32_0 = arith.constant 0 : i32
    return %c0_i32, %arg0 : i32, i32
  }
}

</mosaic_0001>

<llo_original>
// kernel: tpu_custom_call.1
$region0: #{tpu_custom_call.1}
  #allocation0 [shape = 'u32[]', space=smem, size = 0x4, offset = 0x4, fixed_abs, tag = 'smem constant byte address 0x4 - core index']
  #allocation1 [shape = 'u32[144,128]{1,0:T(1,128)}', space=vmem, size = 0x12000, scoped, tag = 'internal scratch']
  #allocation2 [shape = 'f32[1,1]{1,0:T(1,128)S(6)}', space=smem, size = 0x200, scoped, tag = 'scoped memory for tpu_custom_call.1']
  %s0 = inlined_call_operand.vmem [shape: f32[300,16], index: 0, kind: input, shape index: {}]
  %s1 = inlined_call_operand.vmem [shape: bf16[32,16], index: 1, kind: input, shape index: {}]
  %s2 = inlined_call_operand.vmem [shape: f32[32,1], index: 2, kind: input, shape index: {}]
  %s3 = inlined_call_operand.vmem [shape: bf16[32,32], index: 3, kind: input, shape index: {}]
  %s4 = inlined_call_operand.vmem [shape: f32[32,1], index: 4, kind: input, shape index: {}]
  %s5 = inlined_call_operand.vmem [shape: f32[32,1], index: 5, kind: input, shape index: {}]
  %s6 = inlined_call_operand.<no memory space> [shape: f32[1,1], index: 6, kind: input, shape index: {}]
  %s7 = inlined_call_operand.hbm [shape: f32[1,300], index: 7, kind: output, shape index: {}]
  %s8 = sld [smem:[#allocation0]]
  $region61: #{tpu_custom_call.1} parent=0
    _
  %s10 = ssub.s32 1, %s8
  %s11 = scalar_select 0, %s10, %s8
  %12 = sst [smem:[#allocation2]] %s6
  $region1: #{tpu_custom_call.1} parent=0
    #allocation3 [shape = 'u8[2048]{0}', space=vmem, size = 0x800, scoped, tag = 'output window, operand 0']
    #allocation4 [shape = 's32[2]{0}', space=sflag, size = 0x8, scoped, tag = 'scoped memory for tpu_custom_call.1']
    %13 = vsyncpa [#allocation4], 0
    %s14 = scalar_lea.sflag [#allocation4], 1
    %15 = vsyncpa %s14, 0
    loop: start=0, step=1, limit=4
    $region2: #{tpu_custom_call.1} parent=1 // loop_pre_header
      _
    $region3: #{tpu_custom_call.1} parent=1 // loop_header
      %s17 = sphi 0, %s21
      %p18 = scmp.ge.s32.totalorder %s17, 4
      %s27 = sphi 0, %s29
      %s30 = sphi 0, %s27
      %s31 = sphi 0, %s30
      %s47 = sphi 0, %s31
      %s51 = sphi 0, %s51
      %s53 = sphi 0, %s51
      %s54 = sphi 0, %s53
      %s68 = sphi 0, %s54
      %s72 = sphi 0, %s72
      %s74 = sphi 0, %s72
      %s75 = sphi 0, %s74
      %s89 = sphi 0, %s75
      %s93 = sphi 0, %s93
      %s95 = sphi 0, %s93
      %s96 = sphi 0, %s95
      %s110 = sphi 0, %s96
      %s114 = sphi 0, %s114
      %s116 = sphi 0, %s114
      %s117 = sphi 0, %s116
      %s131 = sphi 0, %s117
      %s135 = sphi 0, %s135
      %s137 = sphi 0, %s135
      %s138 = sphi 0, %s137
      %s152 = sphi 0, %s138
      %s156 = sphi 0, %s156
      %s158 = sphi 0, %s156
      %s159 = sphi 0, %s158
      %s173 = sphi 0, %s159
      %s179 = sphi 0, %s181
      %s182 = sphi 0, %s179
      %s183 = sphi 0, %s182
      %s199 = sphi 0, %s183
    $region4: #{tpu_custom_call.1} parent=1 // loop_header_branch
      %20 = sbr.rel (%p18) target = $region8
    $region5: #{tpu_custom_call.1} parent=1 // loop_body
      %s22 = ssub.s32 %s17, 1
      %s23 = ssub.s32 %s17, 2
      %s24 = sadd.s32 %s17, 1
      %s25 = ssub.s32 %s17, %s24
      %p26 = scmp.eq.s32.totalorder %s25, 0
      %s28 = sadd.s32 %s27, 1
      %s29 = scalar_select %p26, %s27, %s28
      %p32 = pneg %p26
      %p33 = scmp.eq.s32.totalorder %s17, 1
      %p34 = por %p32, %p33
      %p35 = scmp.ne.s32.totalorder %s27, %s30
      %p36 = scmp.eq.s32.totalorder %s17, 0
      %p37 = por %p35, %p36
      %p38 = scmp.ne.s32.totalorder %s27, %s30
      %p39 = scmp.eq.s32.totalorder %s22, 1
      %p40 = por %p38, %p39
      %p41 = scmp.ne.s32.totalorder %s30, %s31
      %p42 = scmp.eq.s32.totalorder %s22, 0
      %p43 = por %p41, %p42
      %p44 = scmp.ne.s32.totalorder %s30, %s31
      %p45 = scmp.eq.s32.totalorder %s23, 1
      %p46 = por %p44, %p45
      %p48 = scmp.ne.s32.totalorder %s31, %s47
      %p49 = scmp.eq.s32.totalorder %s23, 0
      %p50 = por %p48, %p49
      %s52 = sadd.s32 %s51, 1
      %p55 = scmp.eq.s32.totalorder %s17, 1
      %p56 = scmp.ne.s32.totalorder %s51, %s53
      %p57 = scmp.eq.s32.totalorder %s17, 0
      %p58 = por %p56, %p57
      %p59 = scmp.ne.s32.totalorder %s51, %s53
      %p60 = scmp.eq.s32.totalorder %s22, 1
      %p61 = por %p59, %p60
      %p62 = scmp.ne.s32.totalorder %s53, %s54
      %p63 = scmp.eq.s32.totalorder %s22, 0
      %p64 = por %p62, %p63
      %p65 = scmp.ne.s32.totalorder %s53, %s54
      %p66 = scmp.eq.s32.totalorder %s23, 1
      %p67 = por %p65, %p66
      %p69 = scmp.ne.s32.totalorder %s54, %s68
      %p70 = scmp.eq.s32.totalorder %s23, 0
      %p71 = por %p69, %p70
      %s73 = sadd.s32 %s72, 1
      %p76 = scmp.eq.s32.totalorder %s17, 1
      %p77 = scmp.ne.s32.totalorder %s72, %s74
      %p78 = scmp.eq.s32.totalorder %s17, 0
      %p79 = por %p77, %p78
      %p80 = scmp.ne.s32.totalorder %s72, %s74
      %p81 = scmp.eq.s32.totalorder %s22, 1
      %p82 = por %p80, %p81
      %p83 = scmp.ne.s32.totalorder %s74, %s75
      %p84 = scmp.eq.s32.totalorder %s22, 0
      %p85 = por %p83, %p84
      %p86 = scmp.ne.s32.totalorder %s74, %s75
      %p87 = scmp.eq.s32.totalorder %s23, 1
      %p88 = por %p86, %p87
      %p90 = scmp.ne.s32.totalorder %s75, %s89
      %p91 = scmp.eq.s32.totalorder %s23, 0
      %p92 = por %p90, %p91
      %s94 = sadd.s32 %s93, 1
      %p97 = scmp.eq.s32.totalorder %s17, 1
      %p98 = scmp.ne.s32.totalorder %s93, %s95
      %p99 = scmp.eq.s32.totalorder %s17, 0
      %p100 = por %p98, %p99
      %p101 = scmp.ne.s32.totalorder %s93, %s95
      %p102 = scmp.eq.s32.totalorder %s22, 1
      %p103 = por %p101, %p102
      %p104 = scmp.ne.s32.totalorder %s95, %s96
      %p105 = scmp.eq.s32.totalorder %s22, 0
      %p106 = por %p104, %p105
      %p107 = scmp.ne.s32.totalorder %s95, %s96
      %p108 = scmp.eq.s32.totalorder %s23, 1
      %p109 = por %p107, %p108
      %p111 = scmp.ne.s32.totalorder %s96, %s110
      %p112 = scmp.eq.s32.totalorder %s23, 0
      %p113 = por %p111, %p112
      %s115 = sadd.s32 %s114, 1
      %p118 = scmp.eq.s32.totalorder %s17, 1
      %p119 = scmp.ne.s32.totalorder %s114, %s116
      %p120 = scmp.eq.s32.totalorder %s17, 0
      %p121 = por %p119, %p120
      %p122 = scmp.ne.s32.totalorder %s114, %s116
      %p123 = scmp.eq.s32.totalorder %s22, 1
      %p124 = por %p122, %p123
      %p125 = scmp.ne.s32.totalorder %s116, %s117
      %p126 = scmp.eq.s32.totalorder %s22, 0
      %p127 = por %p125, %p126
      %p128 = scmp.ne.s32.totalorder %s116, %s117
      %p129 = scmp.eq.s32.totalorder %s23, 1
      %p130 = por %p128, %p129
      %p132 = scmp.ne.s32.totalorder %s117, %s131
      %p133 = scmp.eq.s32.totalorder %s23, 0
      %p134 = por %p132, %p133
      %s136 = sadd.s32 %s135, 1
      %p139 = scmp.eq.s32.totalorder %s17, 1
      %p140 = scmp.ne.s32.totalorder %s135, %s137
      %p141 = scmp.eq.s32.totalorder %s17, 0
      %p142 = por %p140, %p141
      %p143 = scmp.ne.s32.totalorder %s135, %s137
      %p144 = scmp.eq.s32.totalorder %s22, 1
      %p145 = por %p143, %p144
      %p146 = scmp.ne.s32.totalorder %s137, %s138
      %p147 = scmp.eq.s32.totalorder %s22, 0
      %p148 = por %p146, %p147
      %p149 = scmp.ne.s32.totalorder %s137, %s138
      %p150 = scmp.eq.s32.totalorder %s23, 1
      %p151 = por %p149, %p150
      %p153 = scmp.ne.s32.totalorder %s138, %s152
      %p154 = scmp.eq.s32.totalorder %s23, 0
      %p155 = por %p153, %p154
      %s157 = sadd.s32 %s156, 1
      %p160 = scmp.eq.s32.totalorder %s17, 1
      %p161 = scmp.ne.s32.totalorder %s156, %s158
      %p162 = scmp.eq.s32.totalorder %s17, 0
      %p163 = por %p161, %p162
      %p164 = scmp.ne.s32.totalorder %s156, %s158
      %p165 = scmp.eq.s32.totalorder %s22, 1
      %p166 = por %p164, %p165
      %p167 = scmp.ne.s32.totalorder %s158, %s159
      %p168 = scmp.eq.s32.totalorder %s22, 0
      %p169 = por %p167, %p168
      %p170 = scmp.ne.s32.totalorder %s158, %s159
      %p171 = scmp.eq.s32.totalorder %s23, 1
      %p172 = por %p170, %p171
      %p174 = scmp.ne.s32.totalorder %s159, %s173
      %p175 = scmp.eq.s32.totalorder %s23, 0
      %p176 = por %p174, %p175
      %s177 = ssub.s32 %s17, %s24
      %p178 = scmp.eq.s32.totalorder %s177, 0
      %s180 = sadd.s32 %s179, 1
      %s181 = scalar_select %p178, %s179, %s180
      %p184 = pneg %p178
      %p185 = scmp.eq.s32.totalorder %s17, 1
      %p186 = por %p184, %p185
      %p187 = scmp.ne.s32.totalorder %s179, %s182
      %p188 = scmp.eq.s32.totalorder %s17, 0
      %p189 = por %p187, %p188
      %p190 = scmp.ne.s32.totalorder %s179, %s182
      %p191 = scmp.eq.s32.totalorder %s22, 1
      %p192 = por %p190, %p191
      %p193 = scmp.ne.s32.totalorder %s182, %s183
      %p194 = scmp.eq.s32.totalorder %s22, 0
      %p195 = por %p193, %p194
      %p196 = scmp.ne.s32.totalorder %s182, %s183
      %p197 = scmp.eq.s32.totalorder %s23, 1
      %p198 = por %p196, %p197
      %p200 = scmp.ne.s32.totalorder %s183, %s199
      %p201 = scmp.eq.s32.totalorder %s23, 0
      %p202 = por %p200, %p201
      %p203 = scmp.le.s32.totalorder 1, %s17
      %p204 = scmp.lt.s32.totalorder %s17, 3
      %p205 = pnand %p203, %p204
      %p206 = pneg %p205
      // Predicated region
      $region9: #{tpu_custom_call.1} parent=5 // pred_check
        _
      $region10: #{tpu_custom_call.1} parent=5 // pred_check_branch
        %208 = sbr.rel (%p205) target = $region12
      $region11: #{tpu_custom_call.1} parent=5 // pred_region
        %s209 = ssub.s32 %s17, 1
        // Predicated region
        $region13: #{tpu_custom_call.1} parent=11 // pred_check
          %p210 = pneg %p64
        $region14: #{tpu_custom_call.1} parent=11 // pred_check_branch
          %212 = sbr.rel (%p210) target = $region16
        $region15: #{tpu_custom_call.1} parent=11 // pred_region
          _
        $region16: #{tpu_custom_call.1} parent=11 // pred_fallthru
          _
        // Predicated region
        $region17: #{tpu_custom_call.1} parent=11 // pred_check
          %p213 = pneg %p85
        $region18: #{tpu_custom_call.1} parent=11 // pred_check_branch
          %215 = sbr.rel (%p213) target = $region20
        $region19: #{tpu_custom_call.1} parent=11 // pred_region
          _
        $region20: #{tpu_custom_call.1} parent=11 // pred_fallthru
          _
        // Predicated region
        $region21: #{tpu_custom_call.1} parent=11 // pred_check
          %p216 = pneg %p106
        $region22: #{tpu_custom_call.1} parent=11 // pred_check_branch
          %218 = sbr.rel (%p216) target = $region24
        $region23: #{tpu_custom_call.1} parent=11 // pred_region
          _
        $region24: #{tpu_custom_call.1} parent=11 // pred_fallthru
          _
        // Predicated region
        $region25: #{tpu_custom_call.1} parent=11 // pred_check
          %p219 = pneg %p127
        $region26: #{tpu_custom_call.1} parent=11 // pred_check_branch
          %221 = sbr.rel (%p219) target = $region28
        $region27: #{tpu_custom_call.1} parent=11 // pred_region
          _
        $region28: #{tpu_custom_call.1} parent=11 // pred_fallthru
          _
        // Predicated region
        $region29: #{tpu_custom_call.1} parent=11 // pred_check
          %p222 = pneg %p148
        $region30: #{tpu_custom_call.1} parent=11 // pred_check_branch
          %224 = sbr.rel (%p222) target = $region32
        $region31: #{tpu_custom_call.1} parent=11 // pred_region
          _
        $region32: #{tpu_custom_call.1} parent=11 // pred_fallthru
          _
        // Predicated region
        $region33: #{tpu_custom_call.1} parent=11 // pred_check
          %p225 = pneg %p169
        $region34: #{tpu_custom_call.1} parent=11 // pred_check_branch
          %227 = sbr.rel (%p225) target = $region36
        $region35: #{tpu_custom_call.1} parent=11 // pred_region
          _
        $region36: #{tpu_custom_call.1} parent=11 // pred_fallthru
          _
      $region12: #{tpu_custom_call.1} parent=5 // pred_fallthru
        _
      %p228 = scmp.lt.s32.totalorder %s17, 2
      // Predicated region
      $region37: #{tpu_custom_call.1} parent=5 // pred_check
        %p229 = pneg %p228
      $region38: #{tpu_custom_call.1} parent=5 // pred_check_branch
        %231 = sbr.rel (%p229) target = $region40
      $region39: #{tpu_custom_call.1} parent=5 // pred_region
        // Predicated region
        $region41: #{tpu_custom_call.1} parent=39 // pred_check
          %p232 = pneg %p37
        $region42: #{tpu_custom_call.1} parent=39 // pred_check_branch
          %234 = sbr.rel (%p232) target = $region44
        $region43: #{tpu_custom_call.1} parent=39 // pred_region
          %s235 = smul.u32 32, %s17
          %s236 = ssub.s32 38, %s235
          %p237 = scmp.lt.s32.totalorder %s236, 32
          %s238 = scalar_select %p237, %s236, 32
          %s239 = smul.u32 128, %s238
          %p240 = scmp.lt.s32.totalorder %s235, 37
          %s241 = scalar_select %p240, %s235, 37
          %s242 = smul.addr %s241, 8
          %s243 = scalar_lea.vmem %s0, %s242
          %s244 = smul.u32 32, %s17
          %s245 = ssub.s32 38, %s244
          %p246 = scmp.lt.s32.totalorder %s245, 32
          %s247 = scalar_select %p246, %s245, 32
          %s248 = smul.u32 128, %s247
        $region44: #{tpu_custom_call.1} parent=39 // pred_fallthru
          _
      $region40: #{tpu_custom_call.1} parent=5 // pred_fallthru
        _
      %p249 = scmp.le.s32.totalorder 1, %s17
      %p250 = scmp.lt.s32.totalorder %s17, 3
      %p251 = pnand %p249, %p250
      %p252 = pneg %p251
      // Predicated region
      $region45: #{tpu_custom_call.1} parent=5 // pred_check
        _
      $region46: #{tpu_custom_call.1} parent=5 // pred_check_branch
        %254 = sbr.rel (%p251) target = $region48
      $region47: #{tpu_custom_call.1} parent=5 // pred_region
        %s255 = ssub.s32 %s17, 1
        %s256 = smul.u32 32, %s22
        %s257 = ssub.s32 38, %s256
        %p258 = scmp.lt.s32.totalorder %s257, 32
        %s259 = scalar_select %p258, %s257, 32
        %s260 = smul.u32 128, %s259
        %p261 = scmp.lt.s32.totalorder %s256, 37
        %s262 = scalar_select %p261, %s256, 37
        %s263 = smul.addr %s262, 8
        %s264 = scalar_lea.vmem %s0, %s263
        %p265 = pneg %p43
        %p266 = pneg %p40
        %p267 = pneg %p64
        %p268 = pneg %p61
        %p269 = pneg %p85
        %p270 = pneg %p82
        %p271 = pneg %p106
        %p272 = pneg %p103
        %p273 = pneg %p127
        %p274 = pneg %p124
        %p275 = pneg %p148
        %p276 = pneg %p145
        %p277 = pneg %p169
        %p278 = pneg %p166
        %p279 = pneg %p195
        %p280 = pneg %p192
        %s281 = sand.u32 %s182, 1
        %s282 = scalar_lea.sflag [#allocation4], %s281
        %s283 = sand.u32 %s182, 1
        %s284 = smul.addr %s283, 2
        %s285 = scalar_lea.vmem [#allocation3], %s284
        %s286 = smul.u32 32, %s22
        %s287 = ssub.s32 38, %s286
        %p288 = scmp.lt.s32.totalorder %s287, 32
        %s289 = scalar_select %p288, %s287, 32
        %s290 = smul.u32 128, %s289
        %p291 = scmp.lt.s32.totalorder %s286, 37
        %s292 = scalar_select %p291, %s286, 37
        %s293 = smul.addr %s292, 8
        %s294 = scalar_lea.vmem %s0, %s293
        %s295 = smul.u32 32, %s22
        %s296 = ssub.s32 38, %s295
        %p297 = scmp.lt.s32.totalorder %s296, 32
        %s298 = scalar_select %p297, %s296, 32
        %s299 = smul.u32 128, %s298
        %s300 = smul.u32 2, %s22
        %s301 = ssub.s32 3, %s300
        %p302 = scmp.lt.s32.totalorder %s301, 2
        %s303 = scalar_select %p302, %s301, 2
        %s304 = smul.u32 16, %s303
        %v306 = vld [vmem:[%s294] sm:$0xff]
        %v307 = vld [vmem:[%s294 + $0x8] sm:$0xff]
        %v308 = vld [vmem:[%s294 + $0x10] sm:$0xff]
        %v309 = vld [vmem:[%s294 + $0x18] sm:$0xff]
        %v310 = vld [vmem:[%s294 + $0x20] sm:$0xff]
        %v311 = vld [vmem:[%s294 + $0x28] sm:$0xff]
        %v312 = vld [vmem:[%s294 + $0x30] sm:$0xff]
        %v313 = vld [vmem:[%s294 + $0x38] sm:$0xff]
        %v314 = vld [vmem:[%s294 + $0x40] sm:$0xff]
        %v315 = vld [vmem:[%s294 + $0x48] sm:$0xff]
        %v316 = vld [vmem:[%s294 + $0x50] sm:$0xff]
        %v317 = vld [vmem:[%s294 + $0x58] sm:$0xff]
        %v318 = vld [vmem:[%s294 + $0x60] sm:$0xff]
        %v319 = vld [vmem:[%s294 + $0x68] sm:$0xff]
        %v320 = vld [vmem:[%s294 + $0x70] sm:$0xff]
        %v321 = vld [vmem:[%s294 + $0x78] sm:$0xff]
        %v322 = vld [vmem:[%s294 + $0x80] sm:$0xff]
        %v323 = vld [vmem:[%s294 + $0x88] sm:$0xff]
        %v324 = vld [vmem:[%s294 + $0x90] sm:$0xff]
        %v325 = vld [vmem:[%s294 + $0x98] sm:$0xff]
        %v326 = vld [vmem:[%s294 + $0xa0] sm:$0xff]
        %v327 = vld [vmem:[%s294 + $0xa8] sm:$0xff]
        %v328 = vld [vmem:[%s294 + $0xb0] sm:$0xff]
        %v329 = vld [vmem:[%s294 + $0xb8] sm:$0xff]
        %v330 = vld [vmem:[%s294 + $0xc0] sm:$0xff]
        %v331 = vld [vmem:[%s294 + $0xc8] sm:$0xff]
        %v332 = vld [vmem:[%s294 + $0xd0] sm:$0xff]
        %v333 = vld [vmem:[%s294 + $0xd8] sm:$0xff]
        %v334 = vld [vmem:[%s294 + $0xe0] sm:$0xff]
        %v335 = vld [vmem:[%s294 + $0xe8] sm:$0xff]
        %v336 = vld [vmem:[%s294 + $0xf0] sm:$0xff]
        %v337 = vld [vmem:[%s294 + $0xf8] sm:$0xff]
        %v338 = vpack.c.bf16 %v307, %v306
        %v339 = vpack.c.bf16 %v309, %v308
        %v340 = vpack.c.bf16 %v311, %v310
        %v341 = vpack.c.bf16 %v313, %v312
        %v342 = vpack.c.bf16 %v315, %v314
        %v343 = vpack.c.bf16 %v317, %v316
        %v344 = vpack.c.bf16 %v319, %v318
        %v345 = vpack.c.bf16 %v321, %v320
        %v346 = vpack.c.bf16 %v323, %v322
        %v347 = vpack.c.bf16 %v325, %v324
        %v348 = vpack.c.bf16 %v327, %v326
        %v349 = vpack.c.bf16 %v329, %v328
        %v350 = vpack.c.bf16 %v331, %v330
        %v351 = vpack.c.bf16 %v333, %v332
        %v352 = vpack.c.bf16 %v335, %v334
        %v353 = vpack.c.bf16 %v337, %v336
        %v354 = vld [vmem:[%s1] sm:$0xf]
        %v355 = vld [vmem:[%s1 + $0x4] sm:$0xf]
        %v356 = vld [vmem:[%s1 + $0x8] sm:$0xf]
        %v357 = vld [vmem:[%s1 + $0xc] sm:$0xf]
        %v358 = vld [vmem:[%s2] sm:$0xff]
        %v359 = vld [vmem:[%s2 + $0x8] sm:$0xff]
        %v360 = vld [vmem:[%s2 + $0x10] sm:$0xff]
        %v361 = vld [vmem:[%s2 + $0x18] sm:$0xff]
        %363 = vset.pattern.permute.xlu0 0
        %364 = vperm.xlu0 %363, %v358
        %v365 = vpop.permute.xlu0 %364
        %368 = vset.pattern.permute.xlu0 0
        %369 = vperm.xlu0 %368, %v359
        %v370 = vpop.permute.xlu0 %369
        %373 = vset.pattern.permute.xlu0 0
        %374 = vperm.xlu0 %373, %v360
        %v375 = vpop.permute.xlu0 %374
        %378 = vset.pattern.permute.xlu0 0
        %379 = vperm.xlu0 %378, %v361
        %v380 = vpop.permute.xlu0 %379
        %v386 = vunpack.c.l.b16 %v354
        %v387 = vunpack.c.l.b16 %v355
        %v388 = vunpack.c.l.b16 %v356
        %v389 = vunpack.c.l.b16 %v357
        %v390 = vpack.c.b16 %v387, %v386
        %v391 = vpack.c.b16 %v389, %v388
        %vm392 = vcmask 130048
        %v394 = vsel %vm392, %v390, 0
        %v397 = vsel %vm392, %v391, 0
        %v400 = vsel %vm392, %v338, 0
        %v403 = vsel %vm392, %v339, 0
        %v406 = vsel %vm392, %v340, 0
        %v409 = vsel %vm392, %v341, 0
        %v412 = vsel %vm392, %v342, 0
        %v415 = vsel %vm392, %v343, 0
        %v418 = vsel %vm392, %v344, 0
        %v421 = vsel %vm392, %v345, 0
        %v424 = vsel %vm392, %v346, 0
        %v427 = vsel %vm392, %v347, 0
        %v430 = vsel %vm392, %v348, 0
        %v433 = vsel %vm392, %v349, 0
        %v436 = vsel %vm392, %v350, 0
        %v439 = vsel %vm392, %v351, 0
        %v442 = vsel %vm392, %v352, 0
        %v445 = vsel %vm392, %v353, 0
        %447 = vmatprep.subr.bf16.mxu0 0
        %448 = vmatpush1.bf16.xpose.msra.mxu0 %v421
        %449 = vmatprep.subr.bf16.mxu0 0
        %450 = vmatpush1.bf16.xpose.msra.mxu0 %v418
        %451 = vmatprep.subr.bf16.mxu0 0
        %452 = vmatpush1.bf16.xpose.msra.mxu0 %v415
        %453 = vmatprep.subr.bf16.mxu0 0
        %454 = vmatpush1.bf16.xpose.msra.mxu0 %v412
        %455 = vmatprep.subr.bf16.mxu0 0
        %456 = vmatpush1.bf16.xpose.msra.mxu0 %v409
        %457 = vmatprep.subr.bf16.mxu0 0
        %458 = vmatpush1.bf16.xpose.msra.mxu0 %v406
        %459 = vmatprep.subr.bf16.mxu0 0
        %460 = vmatpush1.bf16.xpose.msra.mxu0 %v403
        %461 = vmatprep.subr.bf16.mxu0 0
        %462 = vmatpush1.bf16.xpose.msra.mxu0 %v400
        %463 = vmatprep.subr.bf16.mxu0 0
        %464 = vmatpush2.bf16.xpose.msra.mxu0 %v445
        %465 = vmatprep.subr.bf16.mxu0 0
        %466 = vmatpush2.bf16.xpose.msra.mxu0 %v442
        %467 = vmatprep.subr.bf16.mxu0 0
        %468 = vmatpush2.bf16.xpose.msra.mxu0 %v439
        %469 = vmatprep.subr.bf16.mxu0 0
        %470 = vmatpush2.bf16.xpose.msra.mxu0 %v436
        %471 = vmatprep.subr.bf16.mxu0 0
        %472 = vmatpush2.bf16.xpose.msra.mxu0 %v433
        %473 = vmatprep.subr.bf16.mxu0 0
        %474 = vmatpush2.bf16.xpose.msra.mxu0 %v430
        %475 = vmatprep.subr.bf16.mxu0 0
        %476 = vmatpush2.bf16.xpose.msra.mxu0 %v427
        %477 = vmatprep.subr.bf16.mxu0 0
        %478 = vmatpush2.bf16.xpose.msra.mxu0 %v424
        %479 = vmatprep.mubr.bf16.mxu0 0
        %480 = vmatmul.mubr.bf16.gmra.mxu0 %v394
        %v481 = vpop.f32.mrf.mxu0
        %v482 = vadd.f32 %v365, %v481
        %v483 = vpop.f32.mrf.mxu0
        %v484 = vadd.f32 %v365, %v483
        %v485 = vpop.f32.mrf.mxu0
        %v486 = vadd.f32 %v370, %v485
        %v487 = vpop.f32.mrf.mxu0
        %v488 = vadd.f32 %v370, %v487
        %489 = vmatprep.mubr.bf16.mxu0 0
        %490 = vmatmul.mubr.bf16.gmra.mxu0 %v397
        %v491 = vpop.f32.mrf.mxu0
        %v492 = vadd.f32 %v375, %v491
        %v493 = vpop.f32.mrf.mxu0
        %v494 = vadd.f32 %v375, %v493
        %v495 = vpop.f32.mrf.mxu0
        %v496 = vadd.f32 %v380, %v495
        %v497 = vpop.f32.mrf.mxu0
        %v498 = vadd.f32 %v380, %v497
        %499 = vdwg.mxu0
        %v500 = vmax.f32 %v482, 0.0
        %v501 = vmax.f32 %v484, 0.0
        %v502 = vmax.f32 %v486, 0.0
        %v503 = vmax.f32 %v488, 0.0
        %v504 = vmax.f32 %v492, 0.0
        %v505 = vmax.f32 %v494, 0.0
        %v506 = vmax.f32 %v496, 0.0
        %v507 = vmax.f32 %v498, 0.0
        %v508 = vpack.c.bf16 %v502, %v500
        %v509 = vpack.c.bf16 %v503, %v501
        %v510 = vpack.c.bf16 %v506, %v504
        %v511 = vpack.c.bf16 %v507, %v505
        %v512 = vld [vmem:[%s3] sm:$0xf]
        %v513 = vld [vmem:[%s3 + $0x4] sm:$0xf]
        %v514 = vld [vmem:[%s3 + $0x8] sm:$0xf]
        %v515 = vld [vmem:[%s3 + $0xc] sm:$0xf]
        %v516 = vld [vmem:[%s4] sm:$0xff]
        %v517 = vld [vmem:[%s4 + $0x8] sm:$0xff]
        %v518 = vld [vmem:[%s4 + $0x10] sm:$0xff]
        %v519 = vld [vmem:[%s4 + $0x18] sm:$0xff]
        %521 = vset.pattern.permute.xlu0 0
        %522 = vperm.xlu0 %521, %v516
        %v523 = vpop.permute.xlu0 %522
        %526 = vset.pattern.permute.xlu0 0
        %527 = vperm.xlu0 %526, %v517
        %v528 = vpop.permute.xlu0 %527
        %531 = vset.pattern.permute.xlu0 0
        %532 = vperm.xlu0 %531, %v518
        %v533 = vpop.permute.xlu0 %532
        %536 = vset.pattern.permute.xlu0 0
        %537 = vperm.xlu0 %536, %v519
        %v538 = vpop.permute.xlu0 %537
        %v544 = vunpack.c.l.b16 %v512
        %v545 = vunpack.c.l.b16 %v513
        %v546 = vunpack.c.l.b16 %v514
        %v547 = vunpack.c.l.b16 %v515
        %v548 = vpack.c.b16 %v545, %v544
        %v549 = vpack.c.b16 %v547, %v546
        %vm550 = vcmask 261120
        %v552 = vsel %vm550, %v548, 0
        %v555 = vsel %vm550, %v549, 0
        %557 = vmatprep.subr.bf16.mxu0 0
        %558 = vmatpush1.bf16.msra.mxu0 0
        %559 = vmatprep.subr.bf16.mxu0 0
        %560 = vmatpush1.bf16.msra.mxu0 0
        %561 = vmatprep.subr.bf16.mxu0 0
        %562 = vmatpush1.bf16.msra.mxu0 0
        %563 = vmatprep.subr.bf16.mxu0 0
        %564 = vmatpush1.bf16.msra.mxu0 0
        %565 = vmatprep.subr.bf16.mxu0 0
        %566 = vmatpush1.bf16.msra.mxu0 0
        %567 = vmatprep.subr.bf16.mxu0 0
        %568 = vmatpush1.bf16.msra.mxu0 0
        %569 = vmatprep.subr.bf16.mxu0 %v511
        %570 = vmatpush1.bf16.msra.mxu0 %v510
        %571 = vmatprep.subr.bf16.mxu0 %v509
        %572 = vmatpush1.bf16.msra.mxu0 %v508
        %573 = vmatprep.subr.bf16.mxu0 0
        %574 = vmatpush2.bf16.msra.mxu0 0
        %575 = vmatprep.subr.bf16.mxu0 0
        %576 = vmatpush2.bf16.msra.mxu0 0
        %577 = vmatprep.subr.bf16.mxu0 0
        %578 = vmatpush2.bf16.msra.mxu0 0
        %579 = vmatprep.subr.bf16.mxu0 0
        %580 = vmatpush2.bf16.msra.mxu0 0
        %581 = vmatprep.subr.bf16.mxu0 0
        %582 = vmatpush2.bf16.msra.mxu0 0
        %583 = vmatprep.subr.bf16.mxu0 0
        %584 = vmatpush2.bf16.msra.mxu0 0
        %585 = vmatprep.subr.bf16.mxu0 0
        %586 = vmatpush2.bf16.msra.mxu0 0
        %587 = vmatprep.subr.bf16.mxu0 0
        %588 = vmatpush2.bf16.msra.mxu0 0
        %589 = vmatprep.mubr.bf16.mxu0 0
        %590 = vmatmul.mubr.bf16.gmra.mxu0 %v552
        %v591 = vpop.f32.mrf.mxu0
        %v592 = vadd.f32 %v523, %v591
        %v593 = vpop.f32.mrf.mxu0
        %v594 = vadd.f32 %v523, %v593
        %v595 = vpop.f32.mrf.mxu0
        %v596 = vadd.f32 %v528, %v595
        %v597 = vpop.f32.mrf.mxu0
        %v598 = vadd.f32 %v528, %v597
        %599 = vmatprep.mubr.bf16.mxu0 0
        %600 = vmatmul.mubr.bf16.gmra.mxu0 %v555
        %v601 = vpop.f32.mrf.mxu0
        %v602 = vadd.f32 %v533, %v601
        %v603 = vpop.f32.mrf.mxu0
        %v604 = vadd.f32 %v533, %v603
        %v605 = vpop.f32.mrf.mxu0
        %v606 = vadd.f32 %v538, %v605
        %v607 = vpop.f32.mrf.mxu0
        %v608 = vadd.f32 %v538, %v607
        %609 = vdwg.mxu0
        %v610 = vmax.f32 %v592, 0.0
        %v611 = vmax.f32 %v594, 0.0
        %v612 = vmax.f32 %v596, 0.0
        %v613 = vmax.f32 %v598, 0.0
        %v614 = vmax.f32 %v602, 0.0
        %v615 = vmax.f32 %v604, 0.0
        %v616 = vmax.f32 %v606, 0.0
        %v617 = vmax.f32 %v608, 0.0
        %v618 = vld [vmem:[%s5] sm:$0xff]
        %v619 = vld [vmem:[%s5 + $0x8] sm:$0xff]
        %v620 = vld [vmem:[%s5 + $0x10] sm:$0xff]
        %v621 = vld [vmem:[%s5 + $0x18] sm:$0xff]
        %623 = vset.pattern.permute.xlu0 0
        %624 = vperm.xlu0 %623, %v618
        %v625 = vpop.permute.xlu0 %624
        %628 = vset.pattern.permute.xlu0 0
        %629 = vperm.xlu0 %628, %v619
        %v630 = vpop.permute.xlu0 %629
        %633 = vset.pattern.permute.xlu0 0
        %634 = vperm.xlu0 %633, %v620
        %v635 = vpop.permute.xlu0 %634
        %638 = vset.pattern.permute.xlu0 0
        %639 = vperm.xlu0 %638, %v621
        %v640 = vpop.permute.xlu0 %639
        %v642 = vmul.f32 %v610, %v625
        %v643 = vmul.f32 %v611, %v625
        %v644 = vmul.f32 %v612, %v630
        %v645 = vmul.f32 %v613, %v630
        %v646 = vmul.f32 %v614, %v635
        %v647 = vmul.f32 %v615, %v635
        %v648 = vmul.f32 %v616, %v640
        %v649 = vmul.f32 %v617, %v640
        %v650 = vadd.f32 %v642, %v644
        %v651 = vadd.f32 %v650, %v646
        %v652 = vadd.f32 %v651, %v648
        %v653 = vrot.slane %v652, 4
        %v654 = vadd.f32 %v652, %v653
        %v655 = vrot.slane %v654, 2
        %v656 = vadd.f32 %v654, %v655
        %v657 = vrot.slane %v656, 1
        %v658 = vadd.f32 %v656, %v657
        %v659 = vadd.f32 %v643, %v645
        %v660 = vadd.f32 %v659, %v647
        %v661 = vadd.f32 %v660, %v649
        %v662 = vrot.slane %v661, 4
        %v663 = vadd.f32 %v661, %v662
        %v664 = vrot.slane %v663, 2
        %v665 = vadd.f32 %v663, %v664
        %v666 = vrot.slane %v665, 1
        %v667 = vadd.f32 %v665, %v666
        %s668 = sld [smem:[#allocation2]]
        %v669 = vstv %s668
        %v670 = vadd.f32 %v658, %v669
        %v671 = vadd.f32 %v667, %v669
        %v672 = vxor.u32 %v670, 2147483648
        %v673 = vxor.u32 %v671, 2147483648
        %v674 = vmul.f32 %v672, 1.442695
        %v675 = vpow.pop %v674
        %v676 = vmul.f32 %v673, 1.442695
        %v677 = vpow.pop %v676
        %v678 = vadd.f32 %v675, 1.0
        %v679 = vadd.f32 %v677, 1.0
        %v680 = vrcp.pop %v678
        %v681 = vmul.f32 1.0, %v680
        %v682 = vrcp.pop %v679
        %v683 = vmul.f32 1.0, %v682
        %v686 = vcombine.low %v681, %v683
        %v688 = vunpack.c.l.s4 1966171168
        %v689 = vunpack.c.0.s8 %v688
        %v690 = vlaneseq
        %v691 = vshrl.u32 %v690, 7
        %v692 = vsub.s32 %v689, %v691
        %v693 = vrot.slane %v686, %v692
        %v695 = vunpack.c.l.s4 1966171168
        %v696 = vunpack.c.0.s8 %v695
        %v697 = vlaneseq
        %v698 = vshrl.u32 %v697, 7
        %v699 = vsub.s32 %v696, %v698
        %v700 = vrot.slane %v693, %v699
        %v702 = vlaneseq
        %vm703 = vcmp.ge.s32.totalorder %v702, 0
        %vm704 = vcmp.lt.s32.totalorder %v702, 256
        %vm705 = vmand %vm703, %vm704
        %706 = vst.msk [vmem:[%s285] sm:$0x3] %vm705, %v700
        %s707 = sand.u32 %s182, 1
        %s708 = scalar_lea.sflag [#allocation4], %s707
        %s709 = sand.u32 %s182, 1
        %s710 = smul.addr %s709, 2
        %s711 = scalar_lea.vmem [#allocation3], %s710
        // Predicated region
        $region49: #{tpu_custom_call.1} parent=47 // pred_check
          %p712 = pneg %p192
        $region50: #{tpu_custom_call.1} parent=47 // pred_check_branch
          %714 = sbr.rel (%p712) target = $region52
        $region51: #{tpu_custom_call.1} parent=47 // pred_region
          %s715 = smul.u32 2, %s22
          %s716 = ssub.s32 3, %s715
          %p717 = scmp.lt.s32.totalorder %s716, 2
          %s718 = scalar_select %p717, %s716, 2
          %s719 = smul.u32 16, %s718
          %s721 = ssub.s32 32, %s719
          %722 = vsyncadd %s708, %s721
          %p723 = scmp.ne.s32.totalorder 0, %s719
          %s724 = smul.addr %s715, 16
          %s725 = scalar_lea.hbm %s7, %s724
          %s726 = sshll.u32 %s718, 4
          %s727 = sshll.u32 %s711, 4
          %s728 = int_to_ptr.vmem [resolvable:$true] %s727
          %730 = dma.vmem_to_hbm [thread:$0]  (%p723), %s728, %s726, %s725, %s708
        $region52: #{tpu_custom_call.1} parent=47 // pred_fallthru
          _
      $region48: #{tpu_custom_call.1} parent=5 // pred_fallthru
        _
      %p731 = scmp.le.s32.totalorder 2, %s17
      // Predicated region
      $region53: #{tpu_custom_call.1} parent=5 // pred_check
        %p732 = pneg %p731
      $region54: #{tpu_custom_call.1} parent=5 // pred_check_branch
        %734 = sbr.rel (%p732) target = $region56
      $region55: #{tpu_custom_call.1} parent=5 // pred_region
        %s735 = ssub.s32 %s17, 2
        // Predicated region
        $region57: #{tpu_custom_call.1} parent=55 // pred_check
          %p736 = pneg %p198
        $region58: #{tpu_custom_call.1} parent=55 // pred_check_branch
          %738 = sbr.rel (%p736) target = $region60
        $region59: #{tpu_custom_call.1} parent=55 // pred_region
          %s739 = sand.u32 %s183, 1
          %s740 = scalar_lea.sflag [#allocation4], %s739
          %s741 = sand.u32 %s183, 1
          %s742 = smul.addr %s741, 2
          %s743 = scalar_lea.vmem [#allocation3], %s742
          %744 = dma.done %s740, 32
        $region60: #{tpu_custom_call.1} parent=55 // pred_fallthru
          _
      $region56: #{tpu_custom_call.1} parent=5 // pred_fallthru
        _
    $region6: #{tpu_custom_call.1} parent=1 // loop_footer
      %s21 = sadd.s32 1, %s17
    $region7: #{tpu_custom_call.1} parent=1 // loop_footer_branch
      %16 = sbr.rel target = $region3
    $region8: #{tpu_custom_call.1} parent=1 // loop_exit
      _
    %745 = vsyncpa [#allocation4], 1
    %s746 = scalar_lea.sflag [#allocation4], 1
    %747 = vsyncpa %s746, 1

</llo_original>
